<compile_context>
chip_gen: v6e
topology: v6e:2x2x1
jax: 0.10.0
libtpu: 0.0.40
codegen_flags: <defaults>
</compile_context>

<pallas_src>
import functools

import jax
import jax.numpy as jnp
from jax.experimental import pallas as pl
from jax.experimental.pallas import tpu as pltpu


# ~(30+20+5+1)*TB*4 B of in-kernel activations + double-buffered x/out; 32768
# lanes -> ~7.8 MiB, safe under every chip's scoped-VMEM default.
_MAX_TILE_BATCH = 32768


def _mlp_kernel(x_ref,
                w1_ref, b1_ref,
                w2_ref, b2_ref,
                w3_ref, b3_ref,
                w4_ref, b4_ref,
                o_ref):
    # x_ref: (1, TB) -- batch on lanes.
    x = x_ref[...]

    # linear1 (in_features=1): K=1 contraction -> pure VPU broadcast multiply-add.
    # (30, 1) * (1, TB) + (30, 1) -> (30, TB)
    y = w1_ref[...] * x + b1_ref[...]
    y = jnp.maximum(y, 0.0)

    # linear2: (20, 30) @ (30, TB) -> (20, TB)   [MXU, f32 accumulate]
    y = jnp.dot(w2_ref[...], y, preferred_element_type=jnp.float32) + b2_ref[...]
    y = jnp.maximum(y, 0.0)

    # linear3: (5, 20) @ (20, TB) -> (5, TB)     [MXU, f32 accumulate]
    y = jnp.dot(w3_ref[...], y, preferred_element_type=jnp.float32) + b3_ref[...]
    y = jnp.maximum(y, 0.0)

    # linear4 (out_features=1): multiply + small sublane reduce (no N=1 matmul).
    # (5, 1) * (5, TB) -> sum over axis 0 -> (1, TB)
    y = jnp.sum(w4_ref[...] * y, axis=0, keepdims=True) + b4_ref[...]

    o_ref[...] = y.astype(o_ref.dtype)


def _const_spec(shape):
    """Full-extent, VMEM-resident block (constant index_map, bound per-shape)."""
    ndim = len(shape)
    return pl.BlockSpec(shape, lambda i, _n=ndim: (0,) * _n)


def _pick_tile_batch(batch):
    """Target at most ~2 balanced grid steps (megacore on v7x; minimal per-step
    overhead on v5e/v6e) while keeping the per-step VMEM footprint modest."""
    half = -(-batch // 2)                 # cdiv(batch, 2)
    tile = -(-half // 128) * 128          # round up to the 128-lane width
    return max(128, min(tile, _MAX_TILE_BATCH))


@functools.partial(jax.jit, static_argnames=("tile_batch",))
def my_mnist_net_forward(x, params, *, tile_batch=None):
    """x: (batch, 1) float32.  params: dict of w1..w4, b1..b4 (PyTorch shapes)."""
    batch = x.shape[0]
    if tile_batch is None:
        tile_batch = _pick_tile_batch(batch)
    assert tile_batch % 128 == 0, "tile_batch must be a multiple of 128 (lane width)"

    # Batch on lanes: present x as (1, batch). No padding -- the ragged last
    # block is handled by Pallas (stores to OOB lanes are masked).
    xt = x.reshape(1, batch)

    # Weights stay in PyTorch (out, in) layout -- used directly as W @ x.
    w1 = params["w1"]                    # (30, 1)
    b1 = params["b1"].reshape(-1, 1)     # (30, 1)
    w2 = params["w2"]                    # (20, 30)
    b2 = params["b2"].reshape(-1, 1)     # (20, 1)
    w3 = params["w3"]                    # (5, 20)
    b3 = params["b3"].reshape(-1, 1)     # (5, 1)
    w4 = params["w4"].reshape(-1, 1)     # (1, 5) -> (5, 1) for the VPU reduce
    b4 = params["b4"].reshape(-1, 1)     # (1, 1)

    grid = (pl.cdiv(batch, tile_batch),)

    in_specs = [
        pl.BlockSpec((1, tile_batch), lambda i: (0, i)),   # x tile (pipelined)
        _const_spec(w1.shape), _const_spec(b1.shape),      # weights/biases: resident
        _const_spec(w2.shape), _const_spec(b2.shape),
        _const_spec(w3.shape), _const_spec(b3.shape),
        _const_spec(w4.shape), _const_spec(b4.shape),
    ]
    out_specs = pl.BlockSpec((1, tile_batch), lambda i: (0, i))

    out_t = pl.pallas_call(
        _mlp_kernel,
        out_shape=jax.ShapeDtypeStruct((1, batch), jnp.float32),
        grid=grid,
        in_specs=in_specs,
        out_specs=out_specs,
        compiler_params=pltpu.CompilerParams(
            dimension_semantics=("parallel",)),  # megacore on v7x; no-op on v5e/v6e
    )(xt, w1, b1, w2, b2, w3, b3, w4, b4)

    # (1, batch) -> (batch, 1)
    return out_t.reshape(batch, 1)


def init_params(key):
    """Deterministic init mirroring nn.Linear shapes (out_features, in_features)."""
    dims = [(30, 1), (20, 30), (5, 20), (1, 5)]
    params = {}
    for i, (out_f, in_f) in enumerate(dims, start=1):
        key, kw, kb = jax.random.split(key, 3)
        bound = 1.0 / (in_f ** 0.5)  # PyTorch default uniform bound
        params[f"w{i}"] = jax.random.uniform(
            kw, (out_f, in_f), jnp.float32, minval=-bound, maxval=bound)
        params[f"b{i}"] = jax.random.uniform(
            kb, (out_f,), jnp.float32, minval=-bound, maxval=bound)
    return params


def reference_forward(x, params):
    y = x @ params["w1"].T + params["b1"]
    y = jnp.maximum(y, 0.0)
    y = y @ params["w2"].T + params["b2"]
    y = jnp.maximum(y, 0.0)
    y = y @ params["w3"].T + params["b3"]
    y = jnp.maximum(y, 0.0)
    y = y @ params["w4"].T + params["b4"]
    return y


if __name__ == "__main__":
    key = jax.random.PRNGKey(0)
    key, kx = jax.random.split(key)

    # Non-multiple-of-128 batch exercises the ragged last block and the
    # auto-picked 2-step grid (tile_batch = 512).
    batch = 1000
    x = jax.random.normal(kx, (batch, 1), jnp.float32)
    params = init_params(key)

    out = my_mnist_net_forward(x, params)
    out = jax.block_until_ready(out)

    ref = reference_forward(x, params)
    assert out.shape == (batch, 1)
    assert jnp.allclose(out, ref, atol=1e-5, rtol=1e-5)

    print("KERNEL_OK")
</pallas_src>

<mosaic_0001>
module attributes {stable_mosaic.version = 11 : i64} {
  func.func @_mlp_kernel(%arg0: i32, %arg1: memref<1x512xf32, #tpu.memory_space<vmem>>, %arg2: memref<30x1xf32, #tpu.memory_space<vmem>>, %arg3: memref<30x1xf32, #tpu.memory_space<vmem>>, %arg4: memref<20x30xf32, #tpu.memory_space<vmem>>, %arg5: memref<20x1xf32, #tpu.memory_space<vmem>>, %arg6: memref<5x20xf32, #tpu.memory_space<vmem>>, %arg7: memref<5x1xf32, #tpu.memory_space<vmem>>, %arg8: memref<5x1xf32, #tpu.memory_space<vmem>>, %arg9: memref<1x1xf32, #tpu.memory_space<vmem>>, %arg10: memref<1x512xf32, #tpu.memory_space<vmem>>) attributes {dimension_semantics = [#tpu.dimension_semantics<parallel>], iteration_bounds = array<i64: 2>, scalar_prefetch = 0 : i64, scratch_operands = 0 : i64, tpu.core_type = #tpu.core_type<tc>, window_params = [{transform_indices = @transform_0, window_bounds = array<i64: 1, 512>}, {pipeline_mode = #tpu.pipeline_mode<synchronous>, transform_indices = @transform_1, window_bounds = array<i64: 30, 1>}, {pipeline_mode = #tpu.pipeline_mode<synchronous>, transform_indices = @transform_2, window_bounds = array<i64: 30, 1>}, {pipeline_mode = #tpu.pipeline_mode<synchronous>, transform_indices = @transform_3, window_bounds = array<i64: 20, 30>}, {pipeline_mode = #tpu.pipeline_mode<synchronous>, transform_indices = @transform_4, window_bounds = array<i64: 20, 1>}, {pipeline_mode = #tpu.pipeline_mode<synchronous>, transform_indices = @transform_5, window_bounds = array<i64: 5, 20>}, {pipeline_mode = #tpu.pipeline_mode<synchronous>, transform_indices = @transform_6, window_bounds = array<i64: 5, 1>}, {pipeline_mode = #tpu.pipeline_mode<synchronous>, transform_indices = @transform_7, window_bounds = array<i64: 5, 1>}, {pipeline_mode = #tpu.pipeline_mode<synchronous>, transform_indices = @transform_8, window_bounds = array<i64: 1, 1>}, {transform_indices = @transform_9, window_bounds = array<i64: 1, 512>}]} {
    %c0 = arith.constant 0 : index
    %c0_0 = arith.constant 0 : index
    %0 = vector.load %arg1[%c0, %c0_0] : memref<1x512xf32, #tpu.memory_space<vmem>>, vector<1x512xf32>
    %c0_1 = arith.constant 0 : index
    %c0_2 = arith.constant 0 : index
    %1 = vector.load %arg2[%c0_1, %c0_2] : memref<30x1xf32, #tpu.memory_space<vmem>>, vector<30x1xf32>
    %2 = vector.broadcast %1 : vector<30x1xf32> to vector<30x512xf32>
    %3 = vector.broadcast %0 : vector<1x512xf32> to vector<30x512xf32>
    %4 = arith.mulf %2, %3 : vector<30x512xf32>
    %c0_3 = arith.constant 0 : index
    %c0_4 = arith.constant 0 : index
    %5 = vector.load %arg3[%c0_3, %c0_4] : memref<30x1xf32, #tpu.memory_space<vmem>>, vector<30x1xf32>
    %6 = vector.broadcast %5 : vector<30x1xf32> to vector<30x512xf32>
    %7 = arith.addf %4, %6 : vector<30x512xf32>
    %cst = arith.constant 0.000000e+00 : f32
    %8 = vector.broadcast %cst : f32 to vector<30x512xf32>
    %9 = arith.maximumf %7, %8 : vector<30x512xf32>
    %c0_5 = arith.constant 0 : index
    %c0_6 = arith.constant 0 : index
    %10 = vector.load %arg4[%c0_5, %c0_6] : memref<20x30xf32, #tpu.memory_space<vmem>>, vector<20x30xf32>
    %cst_7 = arith.constant dense<0.000000e+00> : vector<20x512xf32>
    %11 = tpu.matmul %10, %9, %cst_7 {dimension_numbers = #tpu.dot_dimension_numbers<[1], [0], [0], [1], [0, 0, 1, 1], [], []>} : vector<20x30xf32>, vector<30x512xf32>, vector<20x512xf32> -> vector<20x512xf32>
    %c0_8 = arith.constant 0 : index
    %c0_9 = arith.constant 0 : index
    %12 = vector.load %arg5[%c0_8, %c0_9] : memref<20x1xf32, #tpu.memory_space<vmem>>, vector<20x1xf32>
    %13 = vector.broadcast %12 : vector<20x1xf32> to vector<20x512xf32>
    %14 = arith.addf %11, %13 : vector<20x512xf32>
    %cst_10 = arith.constant 0.000000e+00 : f32
    %15 = vector.broadcast %cst_10 : f32 to vector<20x512xf32>
    %16 = arith.maximumf %14, %15 : vector<20x512xf32>
    %c0_11 = arith.constant 0 : index
    %c0_12 = arith.constant 0 : index
    %17 = vector.load %arg6[%c0_11, %c0_12] : memref<5x20xf32, #tpu.memory_space<vmem>>, vector<5x20xf32>
    %cst_13 = arith.constant dense<0.000000e+00> : vector<5x512xf32>
    %18 = tpu.matmul %17, %16, %cst_13 {dimension_numbers = #tpu.dot_dimension_numbers<[1], [0], [0], [1], [0, 0, 1, 1], [], []>} : vector<5x20xf32>, vector<20x512xf32>, vector<5x512xf32> -> vector<5x512xf32>
    %c0_14 = arith.constant 0 : index
    %c0_15 = arith.constant 0 : index
    %19 = vector.load %arg7[%c0_14, %c0_15] : memref<5x1xf32, #tpu.memory_space<vmem>>, vector<5x1xf32>
    %20 = vector.broadcast %19 : vector<5x1xf32> to vector<5x512xf32>
    %21 = arith.addf %18, %20 : vector<5x512xf32>
    %cst_16 = arith.constant 0.000000e+00 : f32
    %22 = vector.broadcast %cst_16 : f32 to vector<5x512xf32>
    %23 = arith.maximumf %21, %22 : vector<5x512xf32>
    %c0_17 = arith.constant 0 : index
    %c0_18 = arith.constant 0 : index
    %24 = vector.load %arg8[%c0_17, %c0_18] : memref<5x1xf32, #tpu.memory_space<vmem>>, vector<5x1xf32>
    %25 = vector.broadcast %24 : vector<5x1xf32> to vector<5x512xf32>
    %26 = arith.mulf %25, %23 : vector<5x512xf32>
    %cst_19 = arith.constant dense<0.000000e+00> : vector<512xf32>
    %27 = vector.multi_reduction <add>, %26, %cst_19 [0] : vector<5x512xf32> to vector<512xf32>
    %28 = vector.shape_cast %27 : vector<512xf32> to vector<1x512xf32>
    %c0_20 = arith.constant 0 : index
    %c0_21 = arith.constant 0 : index
    %29 = vector.load %arg9[%c0_20, %c0_21] : memref<1x1xf32, #tpu.memory_space<vmem>>, vector<1x1xf32>
    %30 = vector.broadcast %29 : vector<1x1xf32> to vector<1x512xf32>
    %31 = arith.addf %28, %30 : vector<1x512xf32>
    %c0_22 = arith.constant 0 : index
    %c0_23 = arith.constant 0 : index
    %32 = vector.load %arg10[%c0_22, %c0_23] : memref<1x512xf32, #tpu.memory_space<vmem>>, vector<1x512xf32>
    tpu.vector_store %arg10[%c0_22, %c0_23], %31 {strides = array<i32>} : memref<1x512xf32, #tpu.memory_space<vmem>>, vector<1x512xf32>,
    return
  }
  func.func @transform_0(%arg0: i32) -> (i32, i32) {
    %c0_i32 = arith.constant 0 : i32
    %c0_i32_0 = arith.constant 0 : i32
    return %c0_i32, %arg0 : i32, i32
  }
  func.func @transform_1(%arg0: i32) -> (i32, i32) {
    %c0_i32 = arith.constant 0 : i32
    %c0_i32_0 = arith.constant 0 : i32
    %c0_i32_1 = arith.constant 0 : i32
    return %c0_i32, %c0_i32_0 : i32, i32
  }
  func.func @transform_2(%arg0: i32) -> (i32, i32) {
    %c0_i32 = arith.constant 0 : i32
    %c0_i32_0 = arith.constant 0 : i32
    %c0_i32_1 = arith.constant 0 : i32
    return %c0_i32, %c0_i32_0 : i32, i32
  }
  func.func @transform_3(%arg0: i32) -> (i32, i32) {
    %c0_i32 = arith.constant 0 : i32
    %c0_i32_0 = arith.constant 0 : i32
    %c0_i32_1 = arith.constant 0 : i32
    return %c0_i32, %c0_i32_0 : i32, i32
  }
  func.func @transform_4(%arg0: i32) -> (i32, i32) {
    %c0_i32 = arith.constant 0 : i32
    %c0_i32_0 = arith.constant 0 : i32
    %c0_i32_1 = arith.constant 0 : i32
    return %c0_i32, %c0_i32_0 : i32, i32
  }
  func.func @transform_5(%arg0: i32) -> (i32, i32) {
    %c0_i32 = arith.constant 0 : i32
    %c0_i32_0 = arith.constant 0 : i32
    %c0_i32_1 = arith.constant 0 : i32
    return %c0_i32, %c0_i32_0 : i32, i32
  }
  func.func @transform_6(%arg0: i32) -> (i32, i32) {
    %c0_i32 = arith.constant 0 : i32
    %c0_i32_0 = arith.constant 0 : i32
    %c0_i32_1 = arith.constant 0 : i32
    return %c0_i32, %c0_i32_0 : i32, i32
  }
  func.func @transform_7(%arg0: i32) -> (i32, i32) {
    %c0_i32 = arith.constant 0 : i32
    %c0_i32_0 = arith.constant 0 : i32
    %c0_i32_1 = arith.constant 0 : i32
    return %c0_i32, %c0_i32_0 : i32, i32
  }
  func.func @transform_8(%arg0: i32) -> (i32, i32) {
    %c0_i32 = arith.constant 0 : i32
    %c0_i32_0 = arith.constant 0 : i32
    %c0_i32_1 = arith.constant 0 : i32
    return %c0_i32, %c0_i32_0 : i32, i32
  }
  func.func @transform_9(%arg0: i32) -> (i32, i32) {
    %c0_i32 = arith.constant 0 : i32
    %c0_i32_0 = arith.constant 0 : i32
    return %c0_i32, %arg0 : i32, i32
  }
}

</mosaic_0001>

<llo_original>
// kernel: my_mnist_net_forward.1
$region0: #{my_mnist_net_forward.1}
  #allocation0 [shape = 'u32[]', space=smem, size = 0x4, offset = 0x4, fixed_abs, tag = 'smem constant byte address 0x4 - core index']
  #allocation1 [shape = 'u32[144,128]{1,0:T(1,128)}', space=vmem, size = 0x12000, scoped, tag = 'internal scratch']
  #allocation2 [shape = 'f32[1,1]{1,0:T(1,128)S(1)}', space=vmem, size = 0x200, scoped, tag = 'scoped memory for my_mnist_net_forward.1']
  %s0 = inlined_call_operand.vmem [shape: f32[1,1000], index: 0, kind: input, shape index: {}]
  %s1 = inlined_call_operand.vmem [shape: f32[30,1], index: 1, kind: input, shape index: {}]
  %s2 = inlined_call_operand.vmem [shape: f32[30,1], index: 2, kind: input, shape index: {}]
  %s3 = inlined_call_operand.vmem [shape: f32[20,30], index: 3, kind: input, shape index: {}]
  %s4 = inlined_call_operand.vmem [shape: f32[20,1], index: 4, kind: input, shape index: {}]
  %s5 = inlined_call_operand.vmem [shape: f32[5,20], index: 5, kind: input, shape index: {}]
  %s6 = inlined_call_operand.vmem [shape: f32[5,1], index: 6, kind: input, shape index: {}]
  %s7 = inlined_call_operand.vmem [shape: f32[5,1], index: 7, kind: input, shape index: {}]
  %s8 = inlined_call_operand.<no memory space> [shape: f32[1,1], index: 8, kind: input, shape index: {}]
  %s9 = inlined_call_operand.hbm [shape: f32[1,1000], index: 9, kind: output, shape index: {}]
  %s10 = sld [smem:[#allocation0]]
  $region69: #{my_mnist_net_forward.1} parent=0
    _
  %s12 = ssub.s32 1, %s10
  %s13 = scalar_select 0, %s12, %s10
  %v14 = vstv %s8
  %15 = vst [vmem:[#allocation2] sm:$0x1] %v14
  $region1: #{my_mnist_net_forward.1} parent=0
    #allocation3 [shape = 'u8[4096]{0}', space=vmem, size = 0x1000, scoped, tag = 'output window, operand 0']
    #allocation4 [shape = 's32[2]{0}', space=sflag, size = 0x8, scoped, tag = 'scoped memory for my_mnist_net_forward.1']
    %16 = vsyncpa [#allocation4], 0
    %s17 = scalar_lea.sflag [#allocation4], 1
    %18 = vsyncpa %s17, 0
    loop: start=0, step=1, limit=4
    $region2: #{my_mnist_net_forward.1} parent=1 // loop_pre_header
      _
    $region3: #{my_mnist_net_forward.1} parent=1 // loop_header
      %s20 = sphi 0, %s24
      %p21 = scmp.ge.s32.totalorder %s20, 4
      %s30 = sphi 0, %s32
      %s33 = sphi 0, %s30
      %s34 = sphi 0, %s33
      %s50 = sphi 0, %s34
      %s54 = sphi 0, %s54
      %s56 = sphi 0, %s54
      %s57 = sphi 0, %s56
      %s71 = sphi 0, %s57
      %s75 = sphi 0, %s75
      %s77 = sphi 0, %s75
      %s78 = sphi 0, %s77
      %s92 = sphi 0, %s78
      %s96 = sphi 0, %s96
      %s98 = sphi 0, %s96
      %s99 = sphi 0, %s98
      %s113 = sphi 0, %s99
      %s117 = sphi 0, %s117
      %s119 = sphi 0, %s117
      %s120 = sphi 0, %s119
      %s134 = sphi 0, %s120
      %s138 = sphi 0, %s138
      %s140 = sphi 0, %s138
      %s141 = sphi 0, %s140
      %s155 = sphi 0, %s141
      %s159 = sphi 0, %s159
      %s161 = sphi 0, %s159
      %s162 = sphi 0, %s161
      %s176 = sphi 0, %s162
      %s180 = sphi 0, %s180
      %s182 = sphi 0, %s180
      %s183 = sphi 0, %s182
      %s197 = sphi 0, %s183
      %s201 = sphi 0, %s201
      %s203 = sphi 0, %s201
      %s204 = sphi 0, %s203
      %s218 = sphi 0, %s204
      %s224 = sphi 0, %s226
      %s227 = sphi 0, %s224
      %s228 = sphi 0, %s227
      %s244 = sphi 0, %s228
    $region4: #{my_mnist_net_forward.1} parent=1 // loop_header_branch
      %23 = sbr.rel (%p21) target = $region8
    $region5: #{my_mnist_net_forward.1} parent=1 // loop_body
      %s25 = ssub.s32 %s20, 1
      %s26 = ssub.s32 %s20, 2
      %s27 = sadd.s32 %s20, 1
      %s28 = ssub.s32 %s20, %s27
      %p29 = scmp.eq.s32.totalorder %s28, 0
      %s31 = sadd.s32 %s30, 1
      %s32 = scalar_select %p29, %s30, %s31
      %p35 = pneg %p29
      %p36 = scmp.eq.s32.totalorder %s20, 1
      %p37 = por %p35, %p36
      %p38 = scmp.ne.s32.totalorder %s30, %s33
      %p39 = scmp.eq.s32.totalorder %s20, 0
      %p40 = por %p38, %p39
      %p41 = scmp.ne.s32.totalorder %s30, %s33
      %p42 = scmp.eq.s32.totalorder %s25, 1
      %p43 = por %p41, %p42
      %p44 = scmp.ne.s32.totalorder %s33, %s34
      %p45 = scmp.eq.s32.totalorder %s25, 0
      %p46 = por %p44, %p45
      %p47 = scmp.ne.s32.totalorder %s33, %s34
      %p48 = scmp.eq.s32.totalorder %s26, 1
      %p49 = por %p47, %p48
      %p51 = scmp.ne.s32.totalorder %s34, %s50
      %p52 = scmp.eq.s32.totalorder %s26, 0
      %p53 = por %p51, %p52
      %s55 = sadd.s32 %s54, 1
      %p58 = scmp.eq.s32.totalorder %s20, 1
      %p59 = scmp.ne.s32.totalorder %s54, %s56
      %p60 = scmp.eq.s32.totalorder %s20, 0
      %p61 = por %p59, %p60
      %p62 = scmp.ne.s32.totalorder %s54, %s56
      %p63 = scmp.eq.s32.totalorder %s25, 1
      %p64 = por %p62, %p63
      %p65 = scmp.ne.s32.totalorder %s56, %s57
      %p66 = scmp.eq.s32.totalorder %s25, 0
      %p67 = por %p65, %p66
      %p68 = scmp.ne.s32.totalorder %s56, %s57
      %p69 = scmp.eq.s32.totalorder %s26, 1
      %p70 = por %p68, %p69
      %p72 = scmp.ne.s32.totalorder %s57, %s71
      %p73 = scmp.eq.s32.totalorder %s26, 0
      %p74 = por %p72, %p73
      %s76 = sadd.s32 %s75, 1
      %p79 = scmp.eq.s32.totalorder %s20, 1
      %p80 = scmp.ne.s32.totalorder %s75, %s77
      %p81 = scmp.eq.s32.totalorder %s20, 0
      %p82 = por %p80, %p81
      %p83 = scmp.ne.s32.totalorder %s75, %s77
      %p84 = scmp.eq.s32.totalorder %s25, 1
      %p85 = por %p83, %p84
      %p86 = scmp.ne.s32.totalorder %s77, %s78
      %p87 = scmp.eq.s32.totalorder %s25, 0
      %p88 = por %p86, %p87
      %p89 = scmp.ne.s32.totalorder %s77, %s78
      %p90 = scmp.eq.s32.totalorder %s26, 1
      %p91 = por %p89, %p90
      %p93 = scmp.ne.s32.totalorder %s78, %s92
      %p94 = scmp.eq.s32.totalorder %s26, 0
      %p95 = por %p93, %p94
      %s97 = sadd.s32 %s96, 1
      %p100 = scmp.eq.s32.totalorder %s20, 1
      %p101 = scmp.ne.s32.totalorder %s96, %s98
      %p102 = scmp.eq.s32.totalorder %s20, 0
      %p103 = por %p101, %p102
      %p104 = scmp.ne.s32.totalorder %s96, %s98
      %p105 = scmp.eq.s32.totalorder %s25, 1
      %p106 = por %p104, %p105
      %p107 = scmp.ne.s32.totalorder %s98, %s99
      %p108 = scmp.eq.s32.totalorder %s25, 0
      %p109 = por %p107, %p108
      %p110 = scmp.ne.s32.totalorder %s98, %s99
      %p111 = scmp.eq.s32.totalorder %s26, 1
      %p112 = por %p110, %p111
      %p114 = scmp.ne.s32.totalorder %s99, %s113
      %p115 = scmp.eq.s32.totalorder %s26, 0
      %p116 = por %p114, %p115
      %s118 = sadd.s32 %s117, 1
      %p121 = scmp.eq.s32.totalorder %s20, 1
      %p122 = scmp.ne.s32.totalorder %s117, %s119
      %p123 = scmp.eq.s32.totalorder %s20, 0
      %p124 = por %p122, %p123
      %p125 = scmp.ne.s32.totalorder %s117, %s119
      %p126 = scmp.eq.s32.totalorder %s25, 1
      %p127 = por %p125, %p126
      %p128 = scmp.ne.s32.totalorder %s119, %s120
      %p129 = scmp.eq.s32.totalorder %s25, 0
      %p130 = por %p128, %p129
      %p131 = scmp.ne.s32.totalorder %s119, %s120
      %p132 = scmp.eq.s32.totalorder %s26, 1
      %p133 = por %p131, %p132
      %p135 = scmp.ne.s32.totalorder %s120, %s134
      %p136 = scmp.eq.s32.totalorder %s26, 0
      %p137 = por %p135, %p136
      %s139 = sadd.s32 %s138, 1
      %p142 = scmp.eq.s32.totalorder %s20, 1
      %p143 = scmp.ne.s32.totalorder %s138, %s140
      %p144 = scmp.eq.s32.totalorder %s20, 0
      %p145 = por %p143, %p144
      %p146 = scmp.ne.s32.totalorder %s138, %s140
      %p147 = scmp.eq.s32.totalorder %s25, 1
      %p148 = por %p146, %p147
      %p149 = scmp.ne.s32.totalorder %s140, %s141
      %p150 = scmp.eq.s32.totalorder %s25, 0
      %p151 = por %p149, %p150
      %p152 = scmp.ne.s32.totalorder %s140, %s141
      %p153 = scmp.eq.s32.totalorder %s26, 1
      %p154 = por %p152, %p153
      %p156 = scmp.ne.s32.totalorder %s141, %s155
      %p157 = scmp.eq.s32.totalorder %s26, 0
      %p158 = por %p156, %p157
      %s160 = sadd.s32 %s159, 1
      %p163 = scmp.eq.s32.totalorder %s20, 1
      %p164 = scmp.ne.s32.totalorder %s159, %s161
      %p165 = scmp.eq.s32.totalorder %s20, 0
      %p166 = por %p164, %p165
      %p167 = scmp.ne.s32.totalorder %s159, %s161
      %p168 = scmp.eq.s32.totalorder %s25, 1
      %p169 = por %p167, %p168
      %p170 = scmp.ne.s32.totalorder %s161, %s162
      %p171 = scmp.eq.s32.totalorder %s25, 0
      %p172 = por %p170, %p171
      %p173 = scmp.ne.s32.totalorder %s161, %s162
      %p174 = scmp.eq.s32.totalorder %s26, 1
      %p175 = por %p173, %p174
      %p177 = scmp.ne.s32.totalorder %s162, %s176
      %p178 = scmp.eq.s32.totalorder %s26, 0
      %p179 = por %p177, %p178
      %s181 = sadd.s32 %s180, 1
      %p184 = scmp.eq.s32.totalorder %s20, 1
      %p185 = scmp.ne.s32.totalorder %s180, %s182
      %p186 = scmp.eq.s32.totalorder %s20, 0
      %p187 = por %p185, %p186
      %p188 = scmp.ne.s32.totalorder %s180, %s182
      %p189 = scmp.eq.s32.totalorder %s25, 1
      %p190 = por %p188, %p189
      %p191 = scmp.ne.s32.totalorder %s182, %s183
      %p192 = scmp.eq.s32.totalorder %s25, 0
      %p193 = por %p191, %p192
      %p194 = scmp.ne.s32.totalorder %s182, %s183
      %p195 = scmp.eq.s32.totalorder %s26, 1
      %p196 = por %p194, %p195
      %p198 = scmp.ne.s32.totalorder %s183, %s197
      %p199 = scmp.eq.s32.totalorder %s26, 0
      %p200 = por %p198, %p199
      %s202 = sadd.s32 %s201, 1
      %p205 = scmp.eq.s32.totalorder %s20, 1
      %p206 = scmp.ne.s32.totalorder %s201, %s203
      %p207 = scmp.eq.s32.totalorder %s20, 0
      %p208 = por %p206, %p207
      %p209 = scmp.ne.s32.totalorder %s201, %s203
      %p210 = scmp.eq.s32.totalorder %s25, 1
      %p211 = por %p209, %p210
      %p212 = scmp.ne.s32.totalorder %s203, %s204
      %p213 = scmp.eq.s32.totalorder %s25, 0
      %p214 = por %p212, %p213
      %p215 = scmp.ne.s32.totalorder %s203, %s204
      %p216 = scmp.eq.s32.totalorder %s26, 1
      %p217 = por %p215, %p216
      %p219 = scmp.ne.s32.totalorder %s204, %s218
      %p220 = scmp.eq.s32.totalorder %s26, 0
      %p221 = por %p219, %p220
      %s222 = ssub.s32 %s20, %s27
      %p223 = scmp.eq.s32.totalorder %s222, 0
      %s225 = sadd.s32 %s224, 1
      %s226 = scalar_select %p223, %s224, %s225
      %p229 = pneg %p223
      %p230 = scmp.eq.s32.totalorder %s20, 1
      %p231 = por %p229, %p230
      %p232 = scmp.ne.s32.totalorder %s224, %s227
      %p233 = scmp.eq.s32.totalorder %s20, 0
      %p234 = por %p232, %p233
      %p235 = scmp.ne.s32.totalorder %s224, %s227
      %p236 = scmp.eq.s32.totalorder %s25, 1
      %p237 = por %p235, %p236
      %p238 = scmp.ne.s32.totalorder %s227, %s228
      %p239 = scmp.eq.s32.totalorder %s25, 0
      %p240 = por %p238, %p239
      %p241 = scmp.ne.s32.totalorder %s227, %s228
      %p242 = scmp.eq.s32.totalorder %s26, 1
      %p243 = por %p241, %p242
      %p245 = scmp.ne.s32.totalorder %s228, %s244
      %p246 = scmp.eq.s32.totalorder %s26, 0
      %p247 = por %p245, %p246
      %p248 = scmp.le.s32.totalorder 1, %s20
      %p249 = scmp.lt.s32.totalorder %s20, 3
      %p250 = pnand %p248, %p249
      %p251 = pneg %p250
      // Predicated region
      $region9: #{my_mnist_net_forward.1} parent=5 // pred_check
        _
      $region10: #{my_mnist_net_forward.1} parent=5 // pred_check_branch
        %253 = sbr.rel (%p250) target = $region12
      $region11: #{my_mnist_net_forward.1} parent=5 // pred_region
        %s254 = ssub.s32 %s20, 1
        // Predicated region
        $region13: #{my_mnist_net_forward.1} parent=11 // pred_check
          %p255 = pneg %p67
        $region14: #{my_mnist_net_forward.1} parent=11 // pred_check_branch
          %257 = sbr.rel (%p255) target = $region16
        $region15: #{my_mnist_net_forward.1} parent=11 // pred_region
          _
        $region16: #{my_mnist_net_forward.1} parent=11 // pred_fallthru
          _
        // Predicated region
        $region17: #{my_mnist_net_forward.1} parent=11 // pred_check
          %p258 = pneg %p88
        $region18: #{my_mnist_net_forward.1} parent=11 // pred_check_branch
          %260 = sbr.rel (%p258) target = $region20
        $region19: #{my_mnist_net_forward.1} parent=11 // pred_region
          _
        $region20: #{my_mnist_net_forward.1} parent=11 // pred_fallthru
          _
        // Predicated region
        $region21: #{my_mnist_net_forward.1} parent=11 // pred_check
          %p261 = pneg %p109
        $region22: #{my_mnist_net_forward.1} parent=11 // pred_check_branch
          %263 = sbr.rel (%p261) target = $region24
        $region23: #{my_mnist_net_forward.1} parent=11 // pred_region
          _
        $region24: #{my_mnist_net_forward.1} parent=11 // pred_fallthru
          _
        // Predicated region
        $region25: #{my_mnist_net_forward.1} parent=11 // pred_check
          %p264 = pneg %p130
        $region26: #{my_mnist_net_forward.1} parent=11 // pred_check_branch
          %266 = sbr.rel (%p264) target = $region28
        $region27: #{my_mnist_net_forward.1} parent=11 // pred_region
          _
        $region28: #{my_mnist_net_forward.1} parent=11 // pred_fallthru
          _
        // Predicated region
        $region29: #{my_mnist_net_forward.1} parent=11 // pred_check
          %p267 = pneg %p151
        $region30: #{my_mnist_net_forward.1} parent=11 // pred_check_branch
          %269 = sbr.rel (%p267) target = $region32
        $region31: #{my_mnist_net_forward.1} parent=11 // pred_region
          _
        $region32: #{my_mnist_net_forward.1} parent=11 // pred_fallthru
          _
        // Predicated region
        $region33: #{my_mnist_net_forward.1} parent=11 // pred_check
          %p270 = pneg %p172
        $region34: #{my_mnist_net_forward.1} parent=11 // pred_check_branch
          %272 = sbr.rel (%p270) target = $region36
        $region35: #{my_mnist_net_forward.1} parent=11 // pred_region
          _
        $region36: #{my_mnist_net_forward.1} parent=11 // pred_fallthru
          _
        // Predicated region
        $region37: #{my_mnist_net_forward.1} parent=11 // pred_check
          %p273 = pneg %p193
        $region38: #{my_mnist_net_forward.1} parent=11 // pred_check_branch
          %275 = sbr.rel (%p273) target = $region40
        $region39: #{my_mnist_net_forward.1} parent=11 // pred_region
          _
        $region40: #{my_mnist_net_forward.1} parent=11 // pred_fallthru
          _
        // Predicated region
        $region41: #{my_mnist_net_forward.1} parent=11 // pred_check
          %p276 = pneg %p214
        $region42: #{my_mnist_net_forward.1} parent=11 // pred_check_branch
          %278 = sbr.rel (%p276) target = $region44
        $region43: #{my_mnist_net_forward.1} parent=11 // pred_region
          _
        $region44: #{my_mnist_net_forward.1} parent=11 // pred_fallthru
          _
      $region12: #{my_mnist_net_forward.1} parent=5 // pred_fallthru
        _
      %p279 = scmp.lt.s32.totalorder %s20, 2
      // Predicated region
      $region45: #{my_mnist_net_forward.1} parent=5 // pred_check
        %p280 = pneg %p279
      $region46: #{my_mnist_net_forward.1} parent=5 // pred_check_branch
        %282 = sbr.rel (%p280) target = $region48
      $region47: #{my_mnist_net_forward.1} parent=5 // pred_region
        // Predicated region
        $region49: #{my_mnist_net_forward.1} parent=47 // pred_check
          %p283 = pneg %p40
        $region50: #{my_mnist_net_forward.1} parent=47 // pred_check_branch
          %285 = sbr.rel (%p283) target = $region52
        $region51: #{my_mnist_net_forward.1} parent=47 // pred_region
          %s286 = smul.u32 4, %s20
          %p287 = scmp.lt.s32.totalorder %s286, 7
          %s288 = scalar_select %p287, %s286, 7
          %s289 = scalar_lea.vmem %s0, %s288
          %s290 = smul.u32 4, %s20
        $region52: #{my_mnist_net_forward.1} parent=47 // pred_fallthru
          _
      $region48: #{my_mnist_net_forward.1} parent=5 // pred_fallthru
        _
      %p291 = scmp.le.s32.totalorder 1, %s20
      %p292 = scmp.lt.s32.totalorder %s20, 3
      %p293 = pnand %p291, %p292
      %p294 = pneg %p293
      // Predicated region
      $region53: #{my_mnist_net_forward.1} parent=5 // pred_check
        _
      $region54: #{my_mnist_net_forward.1} parent=5 // pred_check_branch
        %296 = sbr.rel (%p293) target = $region56
      $region55: #{my_mnist_net_forward.1} parent=5 // pred_region
        %s297 = ssub.s32 %s20, 1
        %s298 = smul.u32 4, %s25
        %p299 = scmp.lt.s32.totalorder %s298, 7
        %s300 = scalar_select %p299, %s298, 7
        %s301 = scalar_lea.vmem %s0, %s300
        %p302 = pneg %p46
        %p303 = pneg %p43
        %p304 = pneg %p67
        %p305 = pneg %p64
        %p306 = pneg %p88
        %p307 = pneg %p85
        %p308 = pneg %p109
        %p309 = pneg %p106
        %p310 = pneg %p130
        %p311 = pneg %p127
        %p312 = pneg %p151
        %p313 = pneg %p148
        %p314 = pneg %p172
        %p315 = pneg %p169
        %p316 = pneg %p193
        %p317 = pneg %p190
        %p318 = pneg %p214
        %p319 = pneg %p211
        %p320 = pneg %p240
        %p321 = pneg %p237
        %s322 = sand.u32 %s227, 1
        %s323 = scalar_lea.sflag [#allocation4], %s322
        %s324 = sand.u32 %s227, 1
        %s325 = smul.addr %s324, 4
        %s326 = scalar_lea.vmem [#allocation3], %s325
        %s327 = smul.u32 4, %s25
        %p328 = scmp.lt.s32.totalorder %s327, 7
        %s329 = scalar_select %p328, %s327, 7
        %s330 = scalar_lea.vmem %s0, %s329
        %s331 = smul.u32 4, %s25
        %s332 = smul.u32 4, %s25
        %v333 = vld [vmem:[%s330] sm:$0xf]
        %v334 = vld [vmem:[%s1] sm:$0xff]
        %v335 = vld [vmem:[%s1 + $0x8] sm:$0xff]
        %v336 = vld [vmem:[%s1 + $0x10] sm:$0xff]
        %v337 = vld [vmem:[%s1 + $0x18] sm:$0x3f]
        %339 = vset.pattern.permute.xlu0 0
        %340 = vperm.xlu0 %339, %v334
        %v341 = vpop.permute.xlu0 %340
        %344 = vset.pattern.permute.xlu0 0
        %345 = vperm.xlu0 %344, %v335
        %v346 = vpop.permute.xlu0 %345
        %349 = vset.pattern.permute.xlu0 0
        %350 = vperm.xlu0 %349, %v336
        %v351 = vpop.permute.xlu0 %350
        %354 = vset.pattern.permute.xlu0 0
        %355 = vperm.xlu0 %354, %v337
        %v356 = vpop.permute.xlu0 %355
        %v359 = vlaneseq
        %v360 = vshrl.u32 %v359, 7
        %v361 = vsub.s32 0, %v360
        %v362 = vrot.slane %v333, %v361
        %v363 = vlaneseq
        %v364 = vshrl.u32 %v363, 7
        %v365 = vsub.s32 1, %v364
        %v366 = vrot.slane %v333, %v365
        %v367 = vlaneseq
        %v368 = vshrl.u32 %v367, 7
        %v369 = vsub.s32 2, %v368
        %v370 = vrot.slane %v333, %v369
        %v371 = vlaneseq
        %v372 = vshrl.u32 %v371, 7
        %v373 = vsub.s32 3, %v372
        %v374 = vrot.slane %v333, %v373
        %v379 = vmul.f32 %v341, %v362
        %v380 = vmul.f32 %v341, %v366
        %v381 = vmul.f32 %v341, %v370
        %v382 = vmul.f32 %v341, %v374
        %v383 = vmul.f32 %v346, %v362
        %v384 = vmul.f32 %v346, %v366
        %v385 = vmul.f32 %v346, %v370
        %v386 = vmul.f32 %v346, %v374
        %v387 = vmul.f32 %v351, %v362
        %v388 = vmul.f32 %v351, %v366
        %v389 = vmul.f32 %v351, %v370
        %v390 = vmul.f32 %v351, %v374
        %v391 = vmul.f32 %v356, %v362
        %v392 = vmul.f32 %v356, %v366
        %v393 = vmul.f32 %v356, %v370
        %v394 = vmul.f32 %v356, %v374
        %v395 = vld [vmem:[%s2] sm:$0xff]
        %v396 = vld [vmem:[%s2 + $0x8] sm:$0xff]
        %v397 = vld [vmem:[%s2 + $0x10] sm:$0xff]
        %v398 = vld [vmem:[%s2 + $0x18] sm:$0x3f]
        %400 = vset.pattern.permute.xlu0 0
        %401 = vperm.xlu0 %400, %v395
        %v402 = vpop.permute.xlu0 %401
        %405 = vset.pattern.permute.xlu0 0
        %406 = vperm.xlu0 %405, %v396
        %v407 = vpop.permute.xlu0 %406
        %410 = vset.pattern.permute.xlu0 0
        %411 = vperm.xlu0 %410, %v397
        %v412 = vpop.permute.xlu0 %411
        %415 = vset.pattern.permute.xlu0 0
        %416 = vperm.xlu0 %415, %v398
        %v417 = vpop.permute.xlu0 %416
        %v419 = vadd.f32 %v379, %v402
        %v420 = vadd.f32 %v380, %v402
        %v421 = vadd.f32 %v381, %v402
        %v422 = vadd.f32 %v382, %v402
        %v423 = vadd.f32 %v383, %v407
        %v424 = vadd.f32 %v384, %v407
        %v425 = vadd.f32 %v385, %v407
        %v426 = vadd.f32 %v386, %v407
        %v427 = vadd.f32 %v387, %v412
        %v428 = vadd.f32 %v388, %v412
        %v429 = vadd.f32 %v389, %v412
        %v430 = vadd.f32 %v390, %v412
        %v431 = vadd.f32 %v391, %v417
        %v432 = vadd.f32 %v392, %v417
        %v433 = vadd.f32 %v393, %v417
        %v434 = vadd.f32 %v394, %v417
        %v435 = vmax.f32 %v419, 0.0
        %v436 = vmax.f32 %v420, 0.0
        %v437 = vmax.f32 %v421, 0.0
        %v438 = vmax.f32 %v422, 0.0
        %v439 = vmax.f32 %v423, 0.0
        %v440 = vmax.f32 %v424, 0.0
        %v441 = vmax.f32 %v425, 0.0
        %v442 = vmax.f32 %v426, 0.0
        %v443 = vmax.f32 %v427, 0.0
        %v444 = vmax.f32 %v428, 0.0
        %v445 = vmax.f32 %v429, 0.0
        %v446 = vmax.f32 %v430, 0.0
        %v447 = vmax.f32 %v431, 0.0
        %v448 = vmax.f32 %v432, 0.0
        %v449 = vmax.f32 %v433, 0.0
        %v450 = vmax.f32 %v434, 0.0
        %v451 = vld [vmem:[%s3] sm:$0xff]
        %v452 = vld [vmem:[%s3 + $0x8] sm:$0xff]
        %v453 = vld [vmem:[%s3 + $0x10] sm:$0xf]
        %v454 = vld [vmem:[%s4] sm:$0xff]
        %v455 = vld [vmem:[%s4 + $0x8] sm:$0xff]
        %v456 = vld [vmem:[%s4 + $0x10] sm:$0xf]
        %458 = vset.pattern.permute.xlu0 0
        %459 = vperm.xlu0 %458, %v454
        %v460 = vpop.permute.xlu0 %459
        %463 = vset.pattern.permute.xlu0 0
        %464 = vperm.xlu0 %463, %v455
        %v465 = vpop.permute.xlu0 %464
        %468 = vset.pattern.permute.xlu0 0
        %469 = vperm.xlu0 %468, %v456
        %v470 = vpop.permute.xlu0 %469
        %vm472 = vcmask 244736
        %v474 = vsel %vm472, %v451, 0
        %v477 = vsel %vm472, %v452, 0
        %v480 = vsel %vm472, %v453, 0
        %vm482 = vcmask 1045504
        %v484 = vsel %vm482, %v447, 0
        %v487 = vsel %vm482, %v448, 0
        %v490 = vsel %vm482, %v449, 0
        %v493 = vsel %vm482, %v450, 0
        %495 = vmatprep.subr.mxu0 0.0
        %496 = vmatpush1.msra.mxu0 0.0
        %497 = vmatprep.subr.mxu0 0.0
        %498 = vmatpush1.msra.mxu0 0.0
        %499 = vmatprep.subr.mxu0 0.0
        %500 = vmatpush1.msra.mxu0 0.0
        %501 = vmatprep.subr.mxu0 0.0
        %502 = vmatpush1.msra.mxu0 0.0
        %503 = vmatprep.subr.mxu0 0.0
        %504 = vmatpush1.msra.mxu0 0.0
        %505 = vmatprep.subr.mxu0 0.0
        %506 = vmatpush1.msra.mxu0 0.0
        %507 = vmatprep.subr.mxu0 0.0
        %508 = vmatpush1.msra.mxu0 0.0
        %509 = vmatprep.subr.mxu0 0.0
        %510 = vmatpush1.msra.mxu0 0.0
        %511 = vmatprep.subr.mxu0 0.0
        %512 = vmatpush1.msra.mxu0 0.0
        %513 = vmatprep.subr.mxu0 0.0
        %514 = vmatpush1.msra.mxu0 0.0
        %515 = vmatprep.subr.mxu0 0.0
        %516 = vmatpush1.msra.mxu0 0.0
        %517 = vmatprep.subr.mxu0 0.0
        %518 = vmatpush1.msra.mxu0 0.0
        %519 = vmatprep.subr.mxu0 %v487
        %520 = vmatpush1.msra.mxu0 %v484
        %521 = vmatprep.subr.mxu0 %v444
        %522 = vmatpush1.msra.mxu0 %v443
        %523 = vmatprep.subr.mxu0 %v440
        %524 = vmatpush1.msra.mxu0 %v439
        %525 = vmatprep.subr.mxu0 %v436
        %526 = vmatpush1.msra.mxu0 %v435
        %527 = vmatprep.subr.mxu0 0.0
        %528 = vmatpush2.msra.mxu0 0.0
        %529 = vmatprep.subr.mxu0 0.0
        %530 = vmatpush2.msra.mxu0 0.0
        %531 = vmatprep.subr.mxu0 0.0
        %532 = vmatpush2.msra.mxu0 0.0
        %533 = vmatprep.subr.mxu0 0.0
        %534 = vmatpush2.msra.mxu0 0.0
        %535 = vmatprep.subr.mxu0 0.0
        %536 = vmatpush2.msra.mxu0 0.0
        %537 = vmatprep.subr.mxu0 0.0
        %538 = vmatpush2.msra.mxu0 0.0
        %539 = vmatprep.subr.mxu0 0.0
        %540 = vmatpush2.msra.mxu0 0.0
        %541 = vmatprep.subr.mxu0 0.0
        %542 = vmatpush2.msra.mxu0 0.0
        %543 = vmatprep.subr.mxu0 0.0
        %544 = vmatpush2.msra.mxu0 0.0
        %545 = vmatprep.subr.mxu0 0.0
        %546 = vmatpush2.msra.mxu0 0.0
        %547 = vmatprep.subr.mxu0 0.0
        %548 = vmatpush2.msra.mxu0 0.0
        %549 = vmatprep.subr.mxu0 0.0
        %550 = vmatpush2.msra.mxu0 0.0
        %551 = vmatprep.subr.mxu0 0.0
        %552 = vmatpush2.msra.mxu0 0.0
        %553 = vmatprep.subr.mxu0 0.0
        %554 = vmatpush2.msra.mxu0 0.0
        %555 = vmatprep.subr.mxu0 0.0
        %556 = vmatpush2.msra.mxu0 0.0
        %557 = vmatprep.subr.mxu0 0.0
        %558 = vmatpush2.msra.mxu0 0.0
        %559 = vmatprep.mubr.f32.mxu0 0.0
        %560 = vmatmul.mubr.f32.gmra.mxu0 %v474
        %v561 = vpop.f32.mrf.mxu0
        %v562 = vadd.f32 %v460, %v561
        %v563 = vpop.f32.mrf.mxu0
        %v564 = vadd.f32 %v460, %v563
        %565 = vmatprep.mubr.f32.mxu0 0.0
        %566 = vmatmul.mubr.f32.gmra.mxu0 %v477
        %v567 = vpop.f32.mrf.mxu0
        %v568 = vadd.f32 %v465, %v567
        %v569 = vpop.f32.mrf.mxu0
        %v570 = vadd.f32 %v465, %v569
        %571 = vmatprep.mubr.f32.mxu0 0.0
        %572 = vmatmul.mubr.f32.gmra.mxu0 %v480
        %v573 = vpop.f32.mrf.mxu0
        %v574 = vadd.f32 %v470, %v573
        %v575 = vpop.f32.mrf.mxu0
        %v576 = vadd.f32 %v470, %v575
        %577 = vdwg.mxu0
        %578 = vmatprep.subr.mxu0 0.0
        %579 = vmatpush1.msra.mxu0 0.0
        %580 = vmatprep.subr.mxu0 0.0
        %581 = vmatpush1.msra.mxu0 0.0
        %582 = vmatprep.subr.mxu0 0.0
        %583 = vmatpush1.msra.mxu0 0.0
        %584 = vmatprep.subr.mxu0 0.0
        %585 = vmatpush1.msra.mxu0 0.0
        %586 = vmatprep.subr.mxu0 0.0
        %587 = vmatpush1.msra.mxu0 0.0
        %588 = vmatprep.subr.mxu0 0.0
        %589 = vmatpush1.msra.mxu0 0.0
        %590 = vmatprep.subr.mxu0 0.0
        %591 = vmatpush1.msra.mxu0 0.0
        %592 = vmatprep.subr.mxu0 0.0
        %593 = vmatpush1.msra.mxu0 0.0
        %594 = vmatprep.subr.mxu0 0.0
        %595 = vmatpush1.msra.mxu0 0.0
        %596 = vmatprep.subr.mxu0 0.0
        %597 = vmatpush1.msra.mxu0 0.0
        %598 = vmatprep.subr.mxu0 0.0
        %599 = vmatpush1.msra.mxu0 0.0
        %600 = vmatprep.subr.mxu0 0.0
        %601 = vmatpush1.msra.mxu0 0.0
        %602 = vmatprep.subr.mxu0 %v493
        %603 = vmatpush1.msra.mxu0 %v490
        %604 = vmatprep.subr.mxu0 %v446
        %605 = vmatpush1.msra.mxu0 %v445
        %606 = vmatprep.subr.mxu0 %v442
        %607 = vmatpush1.msra.mxu0 %v441
        %608 = vmatprep.subr.mxu0 %v438
        %609 = vmatpush1.msra.mxu0 %v437
        %610 = vmatprep.subr.mxu0 0.0
        %611 = vmatpush2.msra.mxu0 0.0
        %612 = vmatprep.subr.mxu0 0.0
        %613 = vmatpush2.msra.mxu0 0.0
        %614 = vmatprep.subr.mxu0 0.0
        %615 = vmatpush2.msra.mxu0 0.0
        %616 = vmatprep.subr.mxu0 0.0
        %617 = vmatpush2.msra.mxu0 0.0
        %618 = vmatprep.subr.mxu0 0.0
        %619 = vmatpush2.msra.mxu0 0.0
        %620 = vmatprep.subr.mxu0 0.0
        %621 = vmatpush2.msra.mxu0 0.0
        %622 = vmatprep.subr.mxu0 0.0
        %623 = vmatpush2.msra.mxu0 0.0
        %624 = vmatprep.subr.mxu0 0.0
        %625 = vmatpush2.msra.mxu0 0.0
        %626 = vmatprep.subr.mxu0 0.0
        %627 = vmatpush2.msra.mxu0 0.0
        %628 = vmatprep.subr.mxu0 0.0
        %629 = vmatpush2.msra.mxu0 0.0
        %630 = vmatprep.subr.mxu0 0.0
        %631 = vmatpush2.msra.mxu0 0.0
        %632 = vmatprep.subr.mxu0 0.0
        %633 = vmatpush2.msra.mxu0 0.0
        %634 = vmatprep.subr.mxu0 0.0
        %635 = vmatpush2.msra.mxu0 0.0
        %636 = vmatprep.subr.mxu0 0.0
        %637 = vmatpush2.msra.mxu0 0.0
        %638 = vmatprep.subr.mxu0 0.0
        %639 = vmatpush2.msra.mxu0 0.0
        %640 = vmatprep.subr.mxu0 0.0
        %641 = vmatpush2.msra.mxu0 0.0
        %642 = vmatprep.mubr.f32.mxu0 0.0
        %643 = vmatmul.mubr.f32.gmra.mxu0 %v474
        %v644 = vpop.f32.mrf.mxu0
        %v645 = vadd.f32 %v460, %v644
        %v646 = vpop.f32.mrf.mxu0
        %v647 = vadd.f32 %v460, %v646
        %648 = vmatprep.mubr.f32.mxu0 0.0
        %649 = vmatmul.mubr.f32.gmra.mxu0 %v477
        %v650 = vpop.f32.mrf.mxu0
        %v651 = vadd.f32 %v465, %v650
        %v652 = vpop.f32.mrf.mxu0
        %v653 = vadd.f32 %v465, %v652
        %654 = vmatprep.mubr.f32.mxu0 0.0
        %655 = vmatmul.mubr.f32.gmra.mxu0 %v480
        %v656 = vpop.f32.mrf.mxu0
        %v657 = vadd.f32 %v470, %v656
        %v658 = vpop.f32.mrf.mxu0
        %v659 = vadd.f32 %v470, %v658
        %660 = vdwg.mxu0
        %v661 = vmax.f32 %v562, 0.0
        %v662 = vmax.f32 %v564, 0.0
        %v663 = vmax.f32 %v645, 0.0
        %v664 = vmax.f32 %v647, 0.0
        %v665 = vmax.f32 %v568, 0.0
        %v666 = vmax.f32 %v570, 0.0
        %v667 = vmax.f32 %v651, 0.0
        %v668 = vmax.f32 %v653, 0.0
        %v669 = vmax.f32 %v574, 0.0
        %v670 = vmax.f32 %v576, 0.0
        %v671 = vmax.f32 %v657, 0.0
        %v672 = vmax.f32 %v659, 0.0
        %v673 = vld [vmem:[%s5] sm:$0x1f]
        %v674 = vld [vmem:[%s6] sm:$0x1f]
        %676 = vset.pattern.permute.xlu0 0
        %677 = vperm.xlu0 %676, %v674
        %v678 = vpop.permute.xlu0 %677
        %vm680 = vcmask 162816
        %v682 = vsel %vm680, %v673, 0
        %vm684 = vcmask 1043456
        %v686 = vsel %vm684, %v669, 0
        %v689 = vsel %vm684, %v670, 0
        %v692 = vsel %vm684, %v671, 0
        %v695 = vsel %vm684, %v672, 0
        %697 = vmatprep.subr.mxu0 0.0
        %698 = vmatpush1.msra.mxu0 0.0
        %699 = vmatprep.subr.mxu0 0.0
        %700 = vmatpush1.msra.mxu0 0.0
        %701 = vmatprep.subr.mxu0 0.0
        %702 = vmatpush1.msra.mxu0 0.0
        %703 = vmatprep.subr.mxu0 0.0
        %704 = vmatpush1.msra.mxu0 0.0
        %705 = vmatprep.subr.mxu0 0.0
        %706 = vmatpush1.msra.mxu0 0.0
        %707 = vmatprep.subr.mxu0 0.0
        %708 = vmatpush1.msra.mxu0 0.0
        %709 = vmatprep.subr.mxu0 0.0
        %710 = vmatpush1.msra.mxu0 0.0
        %711 = vmatprep.subr.mxu0 0.0
        %712 = vmatpush1.msra.mxu0 0.0
        %713 = vmatprep.subr.mxu0 0.0
        %714 = vmatpush1.msra.mxu0 0.0
        %715 = vmatprep.subr.mxu0 0.0
        %716 = vmatpush1.msra.mxu0 0.0
        %717 = vmatprep.subr.mxu0 0.0
        %718 = vmatpush1.msra.mxu0 0.0
        %719 = vmatprep.subr.mxu0 0.0
        %720 = vmatpush1.msra.mxu0 0.0
        %721 = vmatprep.subr.mxu0 0.0
        %722 = vmatpush1.msra.mxu0 0.0
        %723 = vmatprep.subr.mxu0 %v689
        %724 = vmatpush1.msra.mxu0 %v686
        %725 = vmatprep.subr.mxu0 %v666
        %726 = vmatpush1.msra.mxu0 %v665
        %727 = vmatprep.subr.mxu0 %v662
        %728 = vmatpush1.msra.mxu0 %v661
        %729 = vmatprep.subr.mxu0 0.0
        %730 = vmatpush2.msra.mxu0 0.0
        %731 = vmatprep.subr.mxu0 0.0
        %732 = vmatpush2.msra.mxu0 0.0
        %733 = vmatprep.subr.mxu0 0.0
        %734 = vmatpush2.msra.mxu0 0.0
        %735 = vmatprep.subr.mxu0 0.0
        %736 = vmatpush2.msra.mxu0 0.0
        %737 = vmatprep.subr.mxu0 0.0
        %738 = vmatpush2.msra.mxu0 0.0
        %739 = vmatprep.subr.mxu0 0.0
        %740 = vmatpush2.msra.mxu0 0.0
        %741 = vmatprep.subr.mxu0 0.0
        %742 = vmatpush2.msra.mxu0 0.0
        %743 = vmatprep.subr.mxu0 0.0
        %744 = vmatpush2.msra.mxu0 0.0
        %745 = vmatprep.subr.mxu0 0.0
        %746 = vmatpush2.msra.mxu0 0.0
        %747 = vmatprep.subr.mxu0 0.0
        %748 = vmatpush2.msra.mxu0 0.0
        %749 = vmatprep.subr.mxu0 0.0
        %750 = vmatpush2.msra.mxu0 0.0
        %751 = vmatprep.subr.mxu0 0.0
        %752 = vmatpush2.msra.mxu0 0.0
        %753 = vmatprep.subr.mxu0 0.0
        %754 = vmatpush2.msra.mxu0 0.0
        %755 = vmatprep.subr.mxu0 0.0
        %756 = vmatpush2.msra.mxu0 0.0
        %757 = vmatprep.subr.mxu0 0.0
        %758 = vmatpush2.msra.mxu0 0.0
        %759 = vmatprep.subr.mxu0 0.0
        %760 = vmatpush2.msra.mxu0 0.0
        %761 = vmatprep.mubr.f32.mxu0 0.0
        %762 = vmatmul.mubr.f32.gmra.mxu0 %v682
        %v763 = vpop.f32.mrf.mxu0
        %v764 = vadd.f32 %v678, %v763
        %v765 = vpop.f32.mrf.mxu0
        %v766 = vadd.f32 %v678, %v765
        %767 = vdwg.mxu0
        %768 = vmatprep.subr.mxu0 0.0
        %769 = vmatpush1.msra.mxu0 0.0
        %770 = vmatprep.subr.mxu0 0.0
        %771 = vmatpush1.msra.mxu0 0.0
        %772 = vmatprep.subr.mxu0 0.0
        %773 = vmatpush1.msra.mxu0 0.0
        %774 = vmatprep.subr.mxu0 0.0
        %775 = vmatpush1.msra.mxu0 0.0
        %776 = vmatprep.subr.mxu0 0.0
        %777 = vmatpush1.msra.mxu0 0.0
        %778 = vmatprep.subr.mxu0 0.0
        %779 = vmatpush1.msra.mxu0 0.0
        %780 = vmatprep.subr.mxu0 0.0
        %781 = vmatpush1.msra.mxu0 0.0
        %782 = vmatprep.subr.mxu0 0.0
        %783 = vmatpush1.msra.mxu0 0.0
        %784 = vmatprep.subr.mxu0 0.0
        %785 = vmatpush1.msra.mxu0 0.0
        %786 = vmatprep.subr.mxu0 0.0
        %787 = vmatpush1.msra.mxu0 0.0
        %788 = vmatprep.subr.mxu0 0.0
        %789 = vmatpush1.msra.mxu0 0.0
        %790 = vmatprep.subr.mxu0 0.0
        %791 = vmatpush1.msra.mxu0 0.0
        %792 = vmatprep.subr.mxu0 0.0
        %793 = vmatpush1.msra.mxu0 0.0
        %794 = vmatprep.subr.mxu0 %v695
        %795 = vmatpush1.msra.mxu0 %v692
        %796 = vmatprep.subr.mxu0 %v668
        %797 = vmatpush1.msra.mxu0 %v667
        %798 = vmatprep.subr.mxu0 %v664
        %799 = vmatpush1.msra.mxu0 %v663
        %800 = vmatprep.subr.mxu0 0.0
        %801 = vmatpush2.msra.mxu0 0.0
        %802 = vmatprep.subr.mxu0 0.0
        %803 = vmatpush2.msra.mxu0 0.0
        %804 = vmatprep.subr.mxu0 0.0
        %805 = vmatpush2.msra.mxu0 0.0
        %806 = vmatprep.subr.mxu0 0.0
        %807 = vmatpush2.msra.mxu0 0.0
        %808 = vmatprep.subr.mxu0 0.0
        %809 = vmatpush2.msra.mxu0 0.0
        %810 = vmatprep.subr.mxu0 0.0
        %811 = vmatpush2.msra.mxu0 0.0
        %812 = vmatprep.subr.mxu0 0.0
        %813 = vmatpush2.msra.mxu0 0.0
        %814 = vmatprep.subr.mxu0 0.0
        %815 = vmatpush2.msra.mxu0 0.0
        %816 = vmatprep.subr.mxu0 0.0
        %817 = vmatpush2.msra.mxu0 0.0
        %818 = vmatprep.subr.mxu0 0.0
        %819 = vmatpush2.msra.mxu0 0.0
        %820 = vmatprep.subr.mxu0 0.0
        %821 = vmatpush2.msra.mxu0 0.0
        %822 = vmatprep.subr.mxu0 0.0
        %823 = vmatpush2.msra.mxu0 0.0
        %824 = vmatprep.subr.mxu0 0.0
        %825 = vmatpush2.msra.mxu0 0.0
        %826 = vmatprep.subr.mxu0 0.0
        %827 = vmatpush2.msra.mxu0 0.0
        %828 = vmatprep.subr.mxu0 0.0
        %829 = vmatpush2.msra.mxu0 0.0
        %830 = vmatprep.subr.mxu0 0.0
        %831 = vmatpush2.msra.mxu0 0.0
        %832 = vmatprep.mubr.f32.mxu0 0.0
        %833 = vmatmul.mubr.f32.gmra.mxu0 %v682
        %v834 = vpop.f32.mrf.mxu0
        %v835 = vadd.f32 %v678, %v834
        %v836 = vpop.f32.mrf.mxu0
        %v837 = vadd.f32 %v678, %v836
        %838 = vdwg.mxu0
        %v839 = vmax.f32 %v764, 0.0
        %v840 = vmax.f32 %v766, 0.0
        %v841 = vmax.f32 %v835, 0.0
        %v842 = vmax.f32 %v837, 0.0
        %v843 = vld [vmem:[%s7] sm:$0x1f]
        %845 = vset.pattern.permute.xlu0 0
        %846 = vperm.xlu0 %845, %v843
        %v847 = vpop.permute.xlu0 %846
        %v849 = vmul.f32 %v847, %v839
        %v850 = vmul.f32 %v847, %v840
        %v851 = vmul.f32 %v847, %v841
        %v852 = vmul.f32 %v847, %v842
        %vm853 = vcmask 1044480
        %v854 = vsel %vm853, %v849, 0.0
        %v855 = vrot.slane %v854, 4
        %v856 = vadd.f32 %v854, %v855
        %v857 = vrot.slane %v856, 2
        %v858 = vadd.f32 %v856, %v857
        %v859 = vrot.slane %v858, 1
        %v860 = vadd.f32 %v858, %v859
        %v861 = vsel %vm853, %v850, 0.0
        %v862 = vrot.slane %v861, 4
        %v863 = vadd.f32 %v861, %v862
        %v864 = vrot.slane %v863, 2
        %v865 = vadd.f32 %v863, %v864
        %v866 = vrot.slane %v865, 1
        %v867 = vadd.f32 %v865, %v866
        %v868 = vsel %vm853, %v851, 0.0
        %v869 = vrot.slane %v868, 4
        %v870 = vadd.f32 %v868, %v869
        %v871 = vrot.slane %v870, 2
        %v872 = vadd.f32 %v870, %v871
        %v873 = vrot.slane %v872, 1
        %v874 = vadd.f32 %v872, %v873
        %v875 = vsel %vm853, %v852, 0.0
        %v876 = vrot.slane %v875, 4
        %v877 = vadd.f32 %v875, %v876
        %v878 = vrot.slane %v877, 2
        %v879 = vadd.f32 %v877, %v878
        %v880 = vrot.slane %v879, 1
        %v881 = vadd.f32 %v879, %v880
        %v882 = vld [vmem:[#allocation2] sm:$0x1]
        %884 = vset.pattern.permute.xlu0 0
        %885 = vperm.xlu0 %884, %v882
        %v886 = vpop.permute.xlu0 %885
        %v888 = vlaneseq
        %v889 = vshrl.u32 %v888, 7
        %v890 = vsub.s32 0, %v889
        %v891 = vrot.slane %v886, %v890
        %v892 = vadd.f32 %v860, %v891
        %v893 = vadd.f32 %v867, %v891
        %v894 = vadd.f32 %v874, %v891
        %v895 = vadd.f32 %v881, %v891
        %v900 = vcombine.low %v892, %v893
        %v901 = vcombine.low %v894, %v895
        %v903 = vunpack.c.l.s4 1966171168
        %v904 = vunpack.c.0.s8 %v903
        %v905 = vlaneseq
        %v906 = vshrl.u32 %v905, 7
        %v907 = vsub.s32 %v904, %v906
        %v908 = vrot.slane %v900, %v907
        %v910 = vunpack.c.l.s4 1966171168
        %v911 = vunpack.c.0.s8 %v910
        %v912 = vlaneseq
        %v913 = vshrl.u32 %v912, 7
        %v914 = vsub.s32 %v911, %v913
        %v915 = vrot.slane %v901, %v914
        %v916 = vcombine.low %v908, %v915
        %v918 = vunpack.c.l.s4 1966171168
        %v919 = vunpack.c.0.s8 %v918
        %v920 = vlaneseq
        %v921 = vshrl.u32 %v920, 7
        %v922 = vsub.s32 %v919, %v921
        %v923 = vrot.slane %v916, %v922
        %v925 = vlaneseq
        %vm926 = vcmp.ge.s32.totalorder %v925, 0
        %vm927 = vcmp.lt.s32.totalorder %v925, 512
        %vm928 = vmand %vm926, %vm927
        %929 = vst.msk [vmem:[%s326] sm:$0xf] %vm928, %v923
        %s930 = sand.u32 %s227, 1
        %s931 = scalar_lea.sflag [#allocation4], %s930
        %s932 = sand.u32 %s227, 1
        %s933 = smul.addr %s932, 4
        %s934 = scalar_lea.vmem [#allocation3], %s933
        // Predicated region
        $region57: #{my_mnist_net_forward.1} parent=55 // pred_check
          %p935 = pneg %p237
        $region58: #{my_mnist_net_forward.1} parent=55 // pred_check_branch
          %937 = sbr.rel (%p935) target = $region60
        $region59: #{my_mnist_net_forward.1} parent=55 // pred_region
          %s938 = smul.u32 4, %s25
          %s940 = ssub.s32 64, 64
          %941 = vsyncadd %s931, %s940
          %s942 = smul.addr %s938, 16
          %s943 = scalar_lea.hbm %s9, %s942
          %s945 = sshll.u32 %s934, 4
          %s946 = int_to_ptr.vmem [resolvable:$true] %s945
          %948 = dma.vmem_to_hbm [thread:$0]  %s946, 64, %s943, %s931
        $region60: #{my_mnist_net_forward.1} parent=55 // pred_fallthru
          _
      $region56: #{my_mnist_net_forward.1} parent=5 // pred_fallthru
        _
      %p949 = scmp.le.s32.totalorder 2, %s20
      // Predicated region
      $region61: #{my_mnist_net_forward.1} parent=5 // pred_check
        %p950 = pneg %p949
      $region62: #{my_mnist_net_forward.1} parent=5 // pred_check_branch
        %952 = sbr.rel (%p950) target = $region64
      $region63: #{my_mnist_net_forward.1} parent=5 // pred_region
        %s953 = ssub.s32 %s20, 2
        // Predicated region
        $region65: #{my_mnist_net_forward.1} parent=63 // pred_check
          %p954 = pneg %p243
        $region66: #{my_mnist_net_forward.1} parent=63 // pred_check_branch
          %956 = sbr.rel (%p954) target = $region68
        $region67: #{my_mnist_net_forward.1} parent=63 // pred_region
          %s957 = sand.u32 %s228, 1
          %s958 = scalar_lea.sflag [#allocation4], %s957
          %s959 = sand.u32 %s228, 1
          %s960 = smul.addr %s959, 4
          %s961 = scalar_lea.vmem [#allocation3], %s960
          %962 = dma.done %s958, 64
        $region68: #{my_mnist_net_forward.1} parent=63 // pred_fallthru
          _
      $region64: #{my_mnist_net_forward.1} parent=5 // pred_fallthru
        _
    $region6: #{my_mnist_net_forward.1} parent=1 // loop_footer
      %s24 = sadd.s32 1, %s20
    $region7: #{my_mnist_net_forward.1} parent=1 // loop_footer_branch
      %19 = sbr.rel target = $region3
    $region8: #{my_mnist_net_forward.1} parent=1 // loop_exit
      _
    %963 = vsyncpa [#allocation4], 1
    %s964 = scalar_lea.sflag [#allocation4], 1
    %965 = vsyncpa %s964, 1

</llo_original>
